<compile_context>
chip_gen: v7x
topology: tpu7x:2x2x1
jax: 0.10.0
libtpu: 0.0.40
codegen_flags: <defaults>
</compile_context>

<pallas_src>
import jax
import jax.numpy as jnp
from jax.experimental import pallas as pl
from jax.experimental.pallas import tpu as pltpu


def _round_up(n: int, m: int) -> int:
    return ((n + m - 1) // m) * m


def mlp_kernel(x_ref, w1_ref, b1_ref, w2_ref, b2_ref, w3_ref, b3_ref, o_ref):
    # Layer 1: bf16 x @ bf16 W1 on the MXU, f32 accumulation.  (H, TB)
    h1 = jnp.dot(w1_ref[...], x_ref[...], preferred_element_type=jnp.float32)
    h1 = jnp.maximum(h1 + b1_ref[...], 0.0)          # f32 VPU work (v5e-safe)

    # Layer 2: keep activations f32; upcast the tiny VMEM-resident weights.
    h2 = jnp.dot(w2_ref[...].astype(jnp.float32), h1,
                 preferred_element_type=jnp.float32)
    h2 = jnp.maximum(h2 + b2_ref[...], 0.0)

    # Layer 3: logits, no activation.  (O, TB) with TB on lanes -> dense vst.
    out = jnp.dot(w3_ref[...].astype(jnp.float32), h2,
                  preferred_element_type=jnp.float32) + b3_ref[...]
    o_ref[...] = out.astype(o_ref.dtype)


def circle_classifier_forward(x, params, *, tile_b: int = 512):
    """x: (B, input_features) f32 (PyTorch convention).

    params: weights in PyTorch (out_features, in_features) layout, bf16;
            biases as (out_features, 1) f32 columns.
    Returns (B, output_features) f32 logits.
    """
    w1, b1, w2, b2, w3, b3 = (params["w1"], params["b1"], params["w2"],
                              params["b2"], params["w3"], params["b3"])
    B, F = x.shape
    O = w3.shape[0]

    # Batch onto lanes: (F, B), bf16 for the (dominant) HBM->VMEM traffic.
    xt = x.T.astype(jnp.bfloat16)

    # Batch tile: multiple of 128 on lanes, >= feedback's 512 when B allows.
    # Footprint (2x double-buffered x-tile + out-tile) is a few KiB — far
    # below the 32 MiB scoped / 64 MiB physical VMEM budget on v7x.
    tb = min(tile_b, _round_up(B, 128))
    Bp = _round_up(B, tb)
    if Bp != B:
        xt = jnp.pad(xt, ((0, 0), (0, Bp - B)))      # pad cols sliced off below
    grid = (Bp // tb,)

    # Weights/biases: one full-array block, constant index_map -> VMEM-resident.
    const = lambda a: pl.BlockSpec(a.shape, lambda i: (0, 0))

    out_t = pl.pallas_call(
        mlp_kernel,
        out_shape=jax.ShapeDtypeStruct((O, Bp), jnp.float32),
        grid=grid,
        in_specs=[
            pl.BlockSpec((F, tb), lambda i: (0, i)),   # x: walk batch tiles
            const(w1), const(b1),
            const(w2), const(b2),
            const(w3), const(b3),
        ],
        out_specs=pl.BlockSpec((O, tb), lambda i: (0, i)),
        compiler_params=pltpu.CompilerParams(
            dimension_semantics=("parallel",),         # megacore on v7x
            vmem_limit_bytes=32 * 1024 * 1024,
        ),
    )(xt, w1, b1, w2, b2, w3, b3)

    return out_t[:, :B].T                              # back to (B, O)


def init_params(key, input_features, output_features, hidden_units):
    """nn.Linear-style U(-1/sqrt(fan_in), 1/sqrt(fan_in)) init.
    Weights kept in PyTorch (out, in) layout, stored bf16; biases (out, 1) f32."""
    ks = jax.random.split(key, 6)

    def lin(kw, kb, fan_in, fan_out):
        bound = 1.0 / jnp.sqrt(fan_in)
        w = jax.random.uniform(kw, (fan_out, fan_in), jnp.float32, -bound, bound)
        b = jax.random.uniform(kb, (fan_out, 1), jnp.float32, -bound, bound)
        return w.astype(jnp.bfloat16), b

    w1, b1 = lin(ks[0], ks[1], input_features, hidden_units)
    w2, b2 = lin(ks[2], ks[3], hidden_units, hidden_units)
    w3, b3 = lin(ks[4], ks[5], hidden_units, output_features)
    return dict(w1=w1, b1=b1, w2=w2, b2=b2, w3=w3, b3=b3)


def reference_forward(x, p):
    """Pure-JAX f32 reference using the same bf16-rounded x / weights."""
    xf = x.astype(jnp.bfloat16).astype(jnp.float32)
    w1 = p["w1"].astype(jnp.float32)
    w2 = p["w2"].astype(jnp.float32)
    w3 = p["w3"].astype(jnp.float32)
    h1 = jnp.maximum(xf @ w1.T + p["b1"].T, 0.0)
    h2 = jnp.maximum(h1 @ w2.T + p["b2"].T, 0.0)
    return h2 @ w3.T + p["b3"].T


if __name__ == "__main__":
    # CircleClassifier(input_features=2, output_features=1, hidden_units=8)
    input_features, output_features, hidden_units = 2, 1, 8
    batch = 8

    key = jax.random.PRNGKey(0)
    k_x, k_p = jax.random.split(key)
    x = jax.random.normal(k_x, (batch, input_features), jnp.float32)
    params = init_params(k_p, input_features, output_features, hidden_units)

    out = jax.block_until_ready(circle_classifier_forward(x, params))
    ref = reference_forward(x, params)
    assert out.shape == (batch, output_features)
    assert jnp.allclose(out, ref, atol=1e-4, rtol=1e-4), "mismatch vs reference"

    # Larger batch: exercises the multi-tile grid and the batch-padding path.
    x_big = jax.random.normal(jax.random.PRNGKey(1), (640, input_features),
                              jnp.float32)
    out_big = jax.block_until_ready(circle_classifier_forward(x_big, params))
    ref_big = reference_forward(x_big, params)
    assert out_big.shape == (640, output_features)
    assert jnp.allclose(out_big, ref_big, atol=1e-4, rtol=1e-4), "big-batch mismatch"

    print("KERNEL_OK")
</pallas_src>

<mosaic_0001>
module attributes {stable_mosaic.version = 11 : i64} {
  func.func @mlp_kernel(%arg0: i32, %arg1: memref<2x128xbf16, #tpu.memory_space<vmem>>, %arg2: memref<8x2xbf16, #tpu.memory_space<vmem>>, %arg3: memref<8x1xf32, #tpu.memory_space<vmem>>, %arg4: memref<8x8xbf16, #tpu.memory_space<vmem>>, %arg5: memref<8x1xf32, #tpu.memory_space<vmem>>, %arg6: memref<1x8xbf16, #tpu.memory_space<vmem>>, %arg7: memref<1x1xf32, #tpu.memory_space<vmem>>, %arg8: memref<1x128xf32, #tpu.memory_space<vmem>>) attributes {dimension_semantics = [#tpu.dimension_semantics<parallel>], iteration_bounds = array<i64: 1>, scalar_prefetch = 0 : i64, scratch_operands = 0 : i64, tpu.core_type = #tpu.core_type<tc>, window_params = [{transform_indices = @transform_0, window_bounds = array<i64: 2, 128>}, {pipeline_mode = #tpu.pipeline_mode<synchronous>, transform_indices = @transform_1, window_bounds = array<i64: 8, 2>}, {pipeline_mode = #tpu.pipeline_mode<synchronous>, transform_indices = @transform_2, window_bounds = array<i64: 8, 1>}, {pipeline_mode = #tpu.pipeline_mode<synchronous>, transform_indices = @transform_3, window_bounds = array<i64: 8, 8>}, {pipeline_mode = #tpu.pipeline_mode<synchronous>, transform_indices = @transform_4, window_bounds = array<i64: 8, 1>}, {pipeline_mode = #tpu.pipeline_mode<synchronous>, transform_indices = @transform_5, window_bounds = array<i64: 1, 8>}, {pipeline_mode = #tpu.pipeline_mode<synchronous>, transform_indices = @transform_6, window_bounds = array<i64: 1, 1>}, {transform_indices = @transform_7, window_bounds = array<i64: 1, 128>}]} {
    %c0 = arith.constant 0 : index
    %c0_0 = arith.constant 0 : index
    %0 = vector.load %arg2[%c0, %c0_0] : memref<8x2xbf16, #tpu.memory_space<vmem>>, vector<8x2xbf16>
    %c0_1 = arith.constant 0 : index
    %c0_2 = arith.constant 0 : index
    %1 = vector.load %arg1[%c0_1, %c0_2] : memref<2x128xbf16, #tpu.memory_space<vmem>>, vector<2x128xbf16>
    %cst = arith.constant dense<0.000000e+00> : vector<8x128xf32>
    %2 = tpu.matmul %0, %1, %cst {dimension_numbers = #tpu.dot_dimension_numbers<[1], [0], [0], [1], [0, 0, 1, 1], [], []>} : vector<8x2xbf16>, vector<2x128xbf16>, vector<8x128xf32> -> vector<8x128xf32>
    %c0_3 = arith.constant 0 : index
    %c0_4 = arith.constant 0 : index
    %3 = vector.load %arg3[%c0_3, %c0_4] : memref<8x1xf32, #tpu.memory_space<vmem>>, vector<8x1xf32>
    %4 = vector.broadcast %3 : vector<8x1xf32> to vector<8x128xf32>
    %5 = arith.addf %2, %4 : vector<8x128xf32>
    %cst_5 = arith.constant 0.000000e+00 : f32
    %6 = vector.broadcast %cst_5 : f32 to vector<8x128xf32>
    %7 = arith.maximumf %5, %6 : vector<8x128xf32>
    %c0_6 = arith.constant 0 : index
    %c0_7 = arith.constant 0 : index
    %8 = vector.load %arg4[%c0_6, %c0_7] : memref<8x8xbf16, #tpu.memory_space<vmem>>, vector<8x8xbf16>
    %9 = arith.extf %8 : vector<8x8xbf16> to vector<8x8xf32>
    %cst_8 = arith.constant dense<0.000000e+00> : vector<8x128xf32>
    %10 = tpu.matmul %9, %7, %cst_8 {dimension_numbers = #tpu.dot_dimension_numbers<[1], [0], [0], [1], [0, 0, 1, 1], [], []>} : vector<8x8xf32>, vector<8x128xf32>, vector<8x128xf32> -> vector<8x128xf32>
    %c0_9 = arith.constant 0 : index
    %c0_10 = arith.constant 0 : index
    %11 = vector.load %arg5[%c0_9, %c0_10] : memref<8x1xf32, #tpu.memory_space<vmem>>, vector<8x1xf32>
    %12 = vector.broadcast %11 : vector<8x1xf32> to vector<8x128xf32>
    %13 = arith.addf %10, %12 : vector<8x128xf32>
    %cst_11 = arith.constant 0.000000e+00 : f32
    %14 = vector.broadcast %cst_11 : f32 to vector<8x128xf32>
    %15 = arith.maximumf %13, %14 : vector<8x128xf32>
    %c0_12 = arith.constant 0 : index
    %c0_13 = arith.constant 0 : index
    %16 = vector.load %arg6[%c0_12, %c0_13] : memref<1x8xbf16, #tpu.memory_space<vmem>>, vector<1x8xbf16>
    %17 = arith.extf %16 : vector<1x8xbf16> to vector<1x8xf32>
    %cst_14 = arith.constant dense<0.000000e+00> : vector<1x128xf32>
    %18 = tpu.matmul %17, %15, %cst_14 {dimension_numbers = #tpu.dot_dimension_numbers<[1], [0], [0], [1], [0, 0, 1, 1], [], []>} : vector<1x8xf32>, vector<8x128xf32>, vector<1x128xf32> -> vector<1x128xf32>
    %c0_15 = arith.constant 0 : index
    %c0_16 = arith.constant 0 : index
    %19 = vector.load %arg7[%c0_15, %c0_16] : memref<1x1xf32, #tpu.memory_space<vmem>>, vector<1x1xf32>
    %20 = vector.broadcast %19 : vector<1x1xf32> to vector<1x128xf32>
    %21 = arith.addf %18, %20 : vector<1x128xf32>
    %c0_17 = arith.constant 0 : index
    %c0_18 = arith.constant 0 : index
    %22 = vector.load %arg8[%c0_17, %c0_18] : memref<1x128xf32, #tpu.memory_space<vmem>>, vector<1x128xf32>
    tpu.vector_store %arg8[%c0_17, %c0_18], %21 {strides = array<i32>} : memref<1x128xf32, #tpu.memory_space<vmem>>, vector<1x128xf32>,
    return
  }
  func.func @transform_0(%arg0: i32) -> (i32, i32) {
    %c0_i32 = arith.constant 0 : i32
    %c0_i32_0 = arith.constant 0 : i32
    return %c0_i32, %arg0 : i32, i32
  }
  func.func @transform_1(%arg0: i32) -> (i32, i32) {
    %c0_i32 = arith.constant 0 : i32
    %c0_i32_0 = arith.constant 0 : i32
    %c0_i32_1 = arith.constant 0 : i32
    return %c0_i32, %c0_i32_0 : i32, i32
  }
  func.func @transform_2(%arg0: i32) -> (i32, i32) {
    %c0_i32 = arith.constant 0 : i32
    %c0_i32_0 = arith.constant 0 : i32
    %c0_i32_1 = arith.constant 0 : i32
    return %c0_i32, %c0_i32_0 : i32, i32
  }
  func.func @transform_3(%arg0: i32) -> (i32, i32) {
    %c0_i32 = arith.constant 0 : i32
    %c0_i32_0 = arith.constant 0 : i32
    %c0_i32_1 = arith.constant 0 : i32
    return %c0_i32, %c0_i32_0 : i32, i32
  }
  func.func @transform_4(%arg0: i32) -> (i32, i32) {
    %c0_i32 = arith.constant 0 : i32
    %c0_i32_0 = arith.constant 0 : i32
    %c0_i32_1 = arith.constant 0 : i32
    return %c0_i32, %c0_i32_0 : i32, i32
  }
  func.func @transform_5(%arg0: i32) -> (i32, i32) {
    %c0_i32 = arith.constant 0 : i32
    %c0_i32_0 = arith.constant 0 : i32
    %c0_i32_1 = arith.constant 0 : i32
    return %c0_i32, %c0_i32_0 : i32, i32
  }
  func.func @transform_6(%arg0: i32) -> (i32, i32) {
    %c0_i32 = arith.constant 0 : i32
    %c0_i32_0 = arith.constant 0 : i32
    %c0_i32_1 = arith.constant 0 : i32
    return %c0_i32, %c0_i32_0 : i32, i32
  }
  func.func @transform_7(%arg0: i32) -> (i32, i32) {
    %c0_i32 = arith.constant 0 : i32
    %c0_i32_0 = arith.constant 0 : i32
    return %c0_i32, %arg0 : i32, i32
  }
}

</mosaic_0001>

<llo_original>
// kernel: tpu_custom_call.1
$region0: #{tpu_custom_call.1}
  #allocation0 [shape = 'u32[]', space=smem, size = 0x4, offset = 0x4, fixed_abs, tag = 'smem constant byte address 0x4 - core index']
  #allocation1 [shape = 'u32[144,128]{1,0:T(1,128)}', space=vmem, size = 0x12000, scoped, tag = 'internal scratch']
  #allocation2 [shape = 'f32[1,1]{1,0:T(1,128)S(1)}', space=vmem, size = 0x200, scoped, tag = 'scoped memory for tpu_custom_call.1']
  %s0 = inlined_call_operand.vmem [shape: bf16[2,128], index: 0, kind: input, shape index: {}]
  %s1 = inlined_call_operand.vmem [shape: bf16[8,2], index: 1, kind: input, shape index: {}]
  %s2 = inlined_call_operand.vmem [shape: f32[8,1], index: 2, kind: input, shape index: {}]
  %s3 = inlined_call_operand.vmem [shape: bf16[8,8], index: 3, kind: input, shape index: {}]
  %s4 = inlined_call_operand.vmem [shape: f32[8,1], index: 4, kind: input, shape index: {}]
  %s5 = inlined_call_operand.vmem [shape: bf16[1,8], index: 5, kind: input, shape index: {}]
  %s6 = inlined_call_operand.<no memory space> [shape: f32[1,1], index: 6, kind: input, shape index: {}]
  %s7 = inlined_call_operand.hbm [shape: f32[1,128], index: 7, kind: output, shape index: {}]
  %s8 = sld [smem:[#allocation0]]
  $region38: #{tpu_custom_call.1} parent=0
    _
  %s10 = ssub.s32 1, %s8
  %s11 = scalar_select 0, %s10, %s8
  %v12 = vstv %s6
  %13 = vst [vmem:[#allocation2] sm:$0x1] %v12
  $region1: #{tpu_custom_call.1} parent=0
    #allocation3 [shape = 'u8[512]{0}', space=vmem, size = 0x400, scoped, tag = 'output window, operand 0, single buffered']
    #allocation4 [shape = 's32[1]{0}', space=sflag, size = 0x4, scoped, tag = 'scoped memory for tpu_custom_call.1']
    %14 = vsyncpa [#allocation4], 0
    // Predicated region
    $region2: #{tpu_custom_call.1} parent=1 // pred_check
      _
    $region3: #{tpu_custom_call.1} parent=1 // pred_check_branch
      %16 = sbr.rel (0) target = $region5
    $region4: #{tpu_custom_call.1} parent=1 // pred_region
      _
    $region5: #{tpu_custom_call.1} parent=1 // pred_fallthru
      _
    // Predicated region
    $region6: #{tpu_custom_call.1} parent=1 // pred_check
      _
    $region7: #{tpu_custom_call.1} parent=1 // pred_check_branch
      %18 = sbr.rel (0) target = $region9
    $region8: #{tpu_custom_call.1} parent=1 // pred_region
      _
    $region9: #{tpu_custom_call.1} parent=1 // pred_fallthru
      _
    // Predicated region
    $region10: #{tpu_custom_call.1} parent=1 // pred_check
      _
    $region11: #{tpu_custom_call.1} parent=1 // pred_check_branch
      %20 = sbr.rel (0) target = $region13
    $region12: #{tpu_custom_call.1} parent=1 // pred_region
      _
    $region13: #{tpu_custom_call.1} parent=1 // pred_fallthru
      _
    // Predicated region
    $region14: #{tpu_custom_call.1} parent=1 // pred_check
      _
    $region15: #{tpu_custom_call.1} parent=1 // pred_check_branch
      %22 = sbr.rel (0) target = $region17
    $region16: #{tpu_custom_call.1} parent=1 // pred_region
      _
    $region17: #{tpu_custom_call.1} parent=1 // pred_fallthru
      _
    // Predicated region
    $region18: #{tpu_custom_call.1} parent=1 // pred_check
      _
    $region19: #{tpu_custom_call.1} parent=1 // pred_check_branch
      %24 = sbr.rel (0) target = $region21
    $region20: #{tpu_custom_call.1} parent=1 // pred_region
      _
    $region21: #{tpu_custom_call.1} parent=1 // pred_fallthru
      _
    // Predicated region
    $region22: #{tpu_custom_call.1} parent=1 // pred_check
      _
    $region23: #{tpu_custom_call.1} parent=1 // pred_check_branch
      %26 = sbr.rel (0) target = $region25
    $region24: #{tpu_custom_call.1} parent=1 // pred_region
      _
    $region25: #{tpu_custom_call.1} parent=1 // pred_fallthru
      _
    // Predicated region
    $region26: #{tpu_custom_call.1} parent=1 // pred_check
      _
    $region27: #{tpu_custom_call.1} parent=1 // pred_check_branch
      %28 = sbr.rel (0) target = $region29
    $region28: #{tpu_custom_call.1} parent=1 // pred_region
      _
    $region29: #{tpu_custom_call.1} parent=1 // pred_fallthru
      _
    %v30 = vld [vmem:[%s1] sm:$0xf]
    %v31 = vld [vmem:[%s0] sm:$0x1]
    %v32 = vld [vmem:[%s2] sm:$0xff]
    %34 = vset.pattern.permute.xlu0 0
    %35 = vperm.xlu0 %34, %v32
    %v36 = vpop.permute.xlu0 %35
    %vm38 = vcmask 15360
    %v40 = vsel %vm38, %v30, 0
    %vm42 = vcmask 1040384
    %v44 = vsel %vm42, %v31, 0
    %46 = vmatprep.subr.bf16.mxu0 0
    %47 = vmatpush1.bf16.msra.mxu0 %v44
    %48 = vmatprep.subr.bf16.mxu0 0
    %49 = vmatpush1.bf16.msra.mxu0 0
    %50 = vmatprep.subr.bf16.mxu0 0
    %51 = vmatpush1.bf16.msra.mxu0 0
    %52 = vmatprep.subr.bf16.mxu0 0
    %53 = vmatpush1.bf16.msra.mxu0 0
    %54 = vmatprep.subr.bf16.mxu0 0
    %55 = vmatpush1.bf16.msra.mxu0 0
    %56 = vmatprep.subr.bf16.mxu0 0
    %57 = vmatpush1.bf16.msra.mxu0 0
    %58 = vmatprep.subr.bf16.mxu0 0
    %59 = vmatpush1.bf16.msra.mxu0 0
    %60 = vmatprep.subr.bf16.mxu0 0
    %61 = vmatpush1.bf16.msra.mxu0 0
    %62 = vmatprep.subr.bf16.mxu0 0
    %63 = vmatpush1.bf16.msra.mxu0 0
    %64 = vmatprep.subr.bf16.mxu0 0
    %65 = vmatpush1.bf16.msra.mxu0 0
    %66 = vmatprep.subr.bf16.mxu0 0
    %67 = vmatpush1.bf16.msra.mxu0 0
    %68 = vmatprep.subr.bf16.mxu0 0
    %69 = vmatpush1.bf16.msra.mxu0 0
    %70 = vmatprep.subr.bf16.mxu0 0
    %71 = vmatpush1.bf16.msra.mxu0 0
    %72 = vmatprep.subr.bf16.mxu0 0
    %73 = vmatpush1.bf16.msra.mxu0 0
    %74 = vmatprep.subr.bf16.mxu0 0
    %75 = vmatpush1.bf16.msra.mxu0 0
    %76 = vmatprep.subr.bf16.mxu0 0
    %77 = vmatpush1.bf16.msra.mxu0 0
    %78 = vmatprep.mubr.bf16.mxu0 0
    %79 = vmatmul.mubr.bf16.gmra.mrb[0].mxu0 %v40
    %v80 = vpop.f32.mrb[0].mxu0
    %v81 = vadd.f32 %v36, %v80
    %v82 = vpop.f32.mrb[0].mxu0
    %v83 = vpop.f32.mrb[0].mxu0
    %v84 = vpop.f32.mrb[0].mxu0
    %85 = vdwg.mxu0
    %v86 = vmax.f32 %v81, 0.0
    %v87 = vld [vmem:[%s3] sm:$0xf]
    %v88 = vunpack.c.l.bf16 %v87
    %v89 = vld [vmem:[%s4] sm:$0xff]
    %91 = vset.pattern.permute.xlu0 0
    %92 = vperm.xlu0 %91, %v89
    %v93 = vpop.permute.xlu0 %92
    %vm95 = vcmask 64512
    %v97 = vsel %vm95, %v88, 0
    %99 = vmatprep.subr.mxu0 0.0
    %100 = vmatpush1.msra.mxu0 %v86
    %101 = vmatprep.subr.mxu0 0.0
    %102 = vmatpush1.msra.mxu0 0.0
    %103 = vmatprep.subr.mxu0 0.0
    %104 = vmatpush1.msra.mxu0 0.0
    %105 = vmatprep.subr.mxu0 0.0
    %106 = vmatpush1.msra.mxu0 0.0
    %107 = vmatprep.subr.mxu0 0.0
    %108 = vmatpush1.msra.mxu0 0.0
    %109 = vmatprep.subr.mxu0 0.0
    %110 = vmatpush1.msra.mxu0 0.0
    %111 = vmatprep.subr.mxu0 0.0
    %112 = vmatpush1.msra.mxu0 0.0
    %113 = vmatprep.subr.mxu0 0.0
    %114 = vmatpush1.msra.mxu0 0.0
    %115 = vmatprep.subr.mxu0 0.0
    %116 = vmatpush1.msra.mxu0 0.0
    %117 = vmatprep.subr.mxu0 0.0
    %118 = vmatpush1.msra.mxu0 0.0
    %119 = vmatprep.subr.mxu0 0.0
    %120 = vmatpush1.msra.mxu0 0.0
    %121 = vmatprep.subr.mxu0 0.0
    %122 = vmatpush1.msra.mxu0 0.0
    %123 = vmatprep.subr.mxu0 0.0
    %124 = vmatpush1.msra.mxu0 0.0
    %125 = vmatprep.subr.mxu0 0.0
    %126 = vmatpush1.msra.mxu0 0.0
    %127 = vmatprep.subr.mxu0 0.0
    %128 = vmatpush1.msra.mxu0 0.0
    %129 = vmatprep.subr.mxu0 0.0
    %130 = vmatpush1.msra.mxu0 0.0
    %131 = vmatprep.subr.mxu0 0.0
    %132 = vmatpush1.msra.mxu0 0.0
    %133 = vmatprep.subr.mxu0 0.0
    %134 = vmatpush1.msra.mxu0 0.0
    %135 = vmatprep.subr.mxu0 0.0
    %136 = vmatpush1.msra.mxu0 0.0
    %137 = vmatprep.subr.mxu0 0.0
    %138 = vmatpush1.msra.mxu0 0.0
    %139 = vmatprep.subr.mxu0 0.0
    %140 = vmatpush1.msra.mxu0 0.0
    %141 = vmatprep.subr.mxu0 0.0
    %142 = vmatpush1.msra.mxu0 0.0
    %143 = vmatprep.subr.mxu0 0.0
    %144 = vmatpush1.msra.mxu0 0.0
    %145 = vmatprep.subr.mxu0 0.0
    %146 = vmatpush1.msra.mxu0 0.0
    %147 = vmatprep.subr.mxu0 0.0
    %148 = vmatpush1.msra.mxu0 0.0
    %149 = vmatprep.subr.mxu0 0.0
    %150 = vmatpush1.msra.mxu0 0.0
    %151 = vmatprep.subr.mxu0 0.0
    %152 = vmatpush1.msra.mxu0 0.0
    %153 = vmatprep.subr.mxu0 0.0
    %154 = vmatpush1.msra.mxu0 0.0
    %155 = vmatprep.subr.mxu0 0.0
    %156 = vmatpush1.msra.mxu0 0.0
    %157 = vmatprep.subr.mxu0 0.0
    %158 = vmatpush1.msra.mxu0 0.0
    %159 = vmatprep.subr.mxu0 0.0
    %160 = vmatpush1.msra.mxu0 0.0
    %161 = vmatprep.subr.mxu0 0.0
    %162 = vmatpush1.msra.mxu0 0.0
    %163 = vmatprep.mubr.f32.mxu0 0.0
    %164 = vmatmul.mubr.f32.gmra.mrb[0].mxu0 %v97
    %v165 = vpop.f32.mrb[0].mxu0
    %v166 = vadd.f32 %v93, %v165
    %v167 = vpop.f32.mrb[0].mxu0
    %168 = vdwg.mxu0
    %v169 = vmax.f32 %v166, 0.0
    %v170 = vld [vmem:[%s5] sm:$0x1]
    %v171 = vunpack.c.l.bf16 %v170
    %v172 = vld [vmem:[#allocation2] sm:$0x1]
    %174 = vset.pattern.permute.xlu0 0
    %175 = vperm.xlu0 %174, %v172
    %v176 = vpop.permute.xlu0 %175
    %v178 = vlaneseq
    %v179 = vshrl.u32 %v178, 7
    %v180 = vsub.s32 0, %v179
    %v181 = vrot.slane %v176, %v180
    %v183 = vsel %vm95, %v171, 0
    %185 = vmatprep.subr.mxu0 0.0
    %186 = vmatpush1.msra.mxu0 %v169
    %187 = vmatprep.subr.mxu0 0.0
    %188 = vmatpush1.msra.mxu0 0.0
    %189 = vmatprep.subr.mxu0 0.0
    %190 = vmatpush1.msra.mxu0 0.0
    %191 = vmatprep.subr.mxu0 0.0
    %192 = vmatpush1.msra.mxu0 0.0
    %193 = vmatprep.subr.mxu0 0.0
    %194 = vmatpush1.msra.mxu0 0.0
    %195 = vmatprep.subr.mxu0 0.0
    %196 = vmatpush1.msra.mxu0 0.0
    %197 = vmatprep.subr.mxu0 0.0
    %198 = vmatpush1.msra.mxu0 0.0
    %199 = vmatprep.subr.mxu0 0.0
    %200 = vmatpush1.msra.mxu0 0.0
    %201 = vmatprep.subr.mxu0 0.0
    %202 = vmatpush1.msra.mxu0 0.0
    %203 = vmatprep.subr.mxu0 0.0
    %204 = vmatpush1.msra.mxu0 0.0
    %205 = vmatprep.subr.mxu0 0.0
    %206 = vmatpush1.msra.mxu0 0.0
    %207 = vmatprep.subr.mxu0 0.0
    %208 = vmatpush1.msra.mxu0 0.0
    %209 = vmatprep.subr.mxu0 0.0
    %210 = vmatpush1.msra.mxu0 0.0
    %211 = vmatprep.subr.mxu0 0.0
    %212 = vmatpush1.msra.mxu0 0.0
    %213 = vmatprep.subr.mxu0 0.0
    %214 = vmatpush1.msra.mxu0 0.0
    %215 = vmatprep.subr.mxu0 0.0
    %216 = vmatpush1.msra.mxu0 0.0
    %217 = vmatprep.subr.mxu0 0.0
    %218 = vmatpush1.msra.mxu0 0.0
    %219 = vmatprep.subr.mxu0 0.0
    %220 = vmatpush1.msra.mxu0 0.0
    %221 = vmatprep.subr.mxu0 0.0
    %222 = vmatpush1.msra.mxu0 0.0
    %223 = vmatprep.subr.mxu0 0.0
    %224 = vmatpush1.msra.mxu0 0.0
    %225 = vmatprep.subr.mxu0 0.0
    %226 = vmatpush1.msra.mxu0 0.0
    %227 = vmatprep.subr.mxu0 0.0
    %228 = vmatpush1.msra.mxu0 0.0
    %229 = vmatprep.subr.mxu0 0.0
    %230 = vmatpush1.msra.mxu0 0.0
    %231 = vmatprep.subr.mxu0 0.0
    %232 = vmatpush1.msra.mxu0 0.0
    %233 = vmatprep.subr.mxu0 0.0
    %234 = vmatpush1.msra.mxu0 0.0
    %235 = vmatprep.subr.mxu0 0.0
    %236 = vmatpush1.msra.mxu0 0.0
    %237 = vmatprep.subr.mxu0 0.0
    %238 = vmatpush1.msra.mxu0 0.0
    %239 = vmatprep.subr.mxu0 0.0
    %240 = vmatpush1.msra.mxu0 0.0
    %241 = vmatprep.subr.mxu0 0.0
    %242 = vmatpush1.msra.mxu0 0.0
    %243 = vmatprep.subr.mxu0 0.0
    %244 = vmatpush1.msra.mxu0 0.0
    %245 = vmatprep.subr.mxu0 0.0
    %246 = vmatpush1.msra.mxu0 0.0
    %247 = vmatprep.subr.mxu0 0.0
    %248 = vmatpush1.msra.mxu0 0.0
    %249 = vmatprep.mubr.f32.mxu0 0.0
    %250 = vmatmul.mubr.f32.gmra.mrb[0].mxu0 %v183
    %v251 = vpop.f32.mrb[0].mxu0
    %v252 = vadd.f32 %v181, %v251
    %v253 = vpop.f32.mrb[0].mxu0
    %254 = vdwg.mxu0
    %255 = vst [vmem:[#allocation3] sm:$0x1] %v252
    // Predicated region
    $region30: #{tpu_custom_call.1} parent=1 // pred_check
      _
    $region31: #{tpu_custom_call.1} parent=1 // pred_check_branch
      %257 = sbr.rel (0) target = $region33
    $region32: #{tpu_custom_call.1} parent=1 // pred_region
      %s259 = ssub.s32 16, 16
      %260 = vsyncadd [#allocation4], %s259
      %s262 = sshll.u32 [#allocation3], 4
      %s263 = int_to_ptr.vmem [resolvable:$true] %s262
      %265 = dma.vmem_to_hbm [thread:$0]  %s263, 16, %s7, [#allocation4]
    $region33: #{tpu_custom_call.1} parent=1 // pred_fallthru
      _
    // Predicated region
    $region34: #{tpu_custom_call.1} parent=1 // pred_check
      _
    $region35: #{tpu_custom_call.1} parent=1 // pred_check_branch
      %267 = sbr.rel (0) target = $region37
    $region36: #{tpu_custom_call.1} parent=1 // pred_region
      %268 = dma.done [#allocation4], 16
    $region37: #{tpu_custom_call.1} parent=1 // pred_fallthru
      _
    %269 = vsyncpa [#allocation4], 1

</llo_original>
